<compile_context>
chip_gen: v7x
topology: tpu7x:2x2x1
jax: 0.10.0
libtpu: 0.0.40
codegen_flags: <defaults>
</compile_context>

<pallas_src>
import jax
import jax.numpy as jnp
from jax import lax
from jax.experimental import pallas as pl
from jax.experimental.pallas import tpu as pltpu

SEQ, BATCH = 8, 8                 # B=8 fills all 8 sublanes of every vreg tile
VOCAB, EMBED, HIDDEN = 64, 32, 32
OUT_DIM = 90
OUT_PAD = 128                     # lane-dense padded output width
H4 = 4 * HIDDEN                   # 128

# Packed weight layout (rows x 256 lanes), all boundaries (8,128)-aligned:
#   rows [0:V)        lanes [0:128)   tab_f   = emb @ w_ih_f.T + (b_ih_f + b_hh_f)
#   rows [0:V)        lanes [128:256) tab_b   = emb @ w_ih_b.T + (b_ih_b + b_hh_b)
#   rows [V:V+H)      lanes [0:128)   w_hh_f.T                   (H, 4H)
#   rows [V:V+H)      lanes [128:256) W_f = w_out[:, :H].T  zero-padded to 128 lanes
#   rows [V+H:V+2H)   lanes [0:128)   W_b = w_out[:, H:].T  zero-padded to 128 lanes
#   row  V+H          lanes [128:256) b_out zero-padded to 128 lanes
PACK_ROWS = VOCAB + 2 * HIDDEN    # 128
PACK_COLS = 2 * H4                # 256


def bilstm_kernel(ids_ref, w_ref, out_ref):
    S, B, V, H = SEQ, BATCH, VOCAB, HIDDEN

    # ---- one-hot of all token ids (S*B, V); ids arrive pre-flattened -------
    ids = ids_ref[...]                                        # (S*B, 1)
    iota = lax.broadcasted_iota(jnp.int32, (S * B, V), 1)
    onehot = (ids == iota).astype(jnp.float32)

    # ---- fused input projection: ONE MXU push for both directions ----------
    tab_cat = w_ref[0:V, :]                                   # (V, 256)
    proj = jnp.dot(onehot, tab_cat,
                   preferred_element_type=jnp.float32)        # (S*B, 256)
    xproj_f = proj[:, 0:H4]                                   # (S*B, 4H)
    xproj_b = proj[(S - 1) * B:S * B, H4:2 * H4]              # (B, 4H), last step

    # ---- static, tile-aligned weight slices from the packed array ----------
    w_hh_f  = w_ref[V:V + H, 0:H4]                            # (H, 4H)
    w_out_f = w_ref[V:V + H, H4:2 * H4]                       # (H, 128)
    w_out_b = w_ref[V + H:V + 2 * H, 0:H4]                    # (H, 128)
    b_out   = w_ref[V + H:V + H + 1, H4:2 * H4]               # (1, 128)

    def activations(gates):
        # Two full-width EUP pushes (sigmoid + tanh on (B, 4H) = (8, 128))
        # instead of per-gate 32-lane pushes.
        sig = jax.nn.sigmoid(gates)
        tnh = jnp.tanh(gates)
        return (sig[:, 0:H], sig[:, H:2 * H],
                tnh[:, 2 * H:3 * H], sig[:, 3 * H:4 * H])

    # ---- backward direction + its half of the output projection ------------
    # output[-1] of the reverse LSTM = its FIRST step (zero init state, only
    # x[S-1] consumed): gates = xproj_b, c = i*g, h = o*tanh(c).
    # NOTE: this shortcut is valid only for output[-1]-at-inference semantics.
    ib, fb, gb, ob = activations(xproj_b)
    hb = ob * jnp.tanh(ib * gb)
    partial = jnp.dot(hb, w_out_b,
                      preferred_element_type=jnp.float32) + b_out   # (B, 128)

    # ---- forward direction, fully unrolled (S = 8 static) ------------------
    # t = 0: h0 = c0 = 0 -> no h @ w_hh matmul and no f*c term.
    i, f, g, o = activations(xproj_f[0:B, :])
    c = i * g
    h = o * jnp.tanh(c)
    for t in range(1, S):
        gates = xproj_f[t * B:(t + 1) * B, :] + jnp.dot(
            h, w_hh_f, preferred_element_type=jnp.float32)
        i, f, g, o = activations(gates)
        c = f * c + i * g
        h = o * jnp.tanh(c)

    # ---- tail: only the forward half of the output projection remains ------
    out_ref[...] = jnp.dot(h, w_out_f,
                           preferred_element_type=jnp.float32) + partial


def bilstm_forward(x, w_packed):
    S, B = x.shape
    ids = x.reshape(S * B, 1)      # layout plumbing in the wrapper, not in-kernel
    out_pad = pl.pallas_call(
        bilstm_kernel,
        out_shape=jax.ShapeDtypeStruct((B, OUT_PAD), jnp.float32),
        in_specs=[pl.BlockSpec(memory_space=pltpu.MemorySpace.VMEM),
                  pl.BlockSpec(memory_space=pltpu.MemorySpace.VMEM)],
        out_specs=pl.BlockSpec(memory_space=pltpu.MemorySpace.VMEM),
    )(ids, w_packed)
    return out_pad[:, :OUT_DIM]


# ------------------------- parameter construction --------------------------
def make_params(key):
    ks = jax.random.split(key, 12)
    lstm_bound = 1.0 / (HIDDEN ** 0.5)
    lin_bound = 1.0 / ((2 * HIDDEN) ** 0.5)

    def unif(k, shape, bound):
        return jax.random.uniform(k, shape, jnp.float32, -bound, bound)

    emb = jax.random.normal(ks[0], (VOCAB, EMBED), jnp.float32)

    # PyTorch layout: weight_ih (4H, E), weight_hh (4H, H), biases (4H,)
    w_ih_f = unif(ks[1], (4 * HIDDEN, EMBED), lstm_bound)
    w_hh_f = unif(ks[2], (4 * HIDDEN, HIDDEN), lstm_bound)
    b_ih_f = unif(ks[3], (4 * HIDDEN,), lstm_bound)
    b_hh_f = unif(ks[4], (4 * HIDDEN,), lstm_bound)

    w_ih_b = unif(ks[5], (4 * HIDDEN, EMBED), lstm_bound)
    w_hh_b = unif(ks[6], (4 * HIDDEN, HIDDEN), lstm_bound)
    b_ih_b = unif(ks[7], (4 * HIDDEN,), lstm_bound)
    b_hh_b = unif(ks[8], (4 * HIDDEN,), lstm_bound)

    w_out = unif(ks[9], (OUT_DIM, 2 * HIDDEN), lin_bound)
    b_out = unif(ks[10], (OUT_DIM,), lin_bound)

    # Fold the frozen embedding into the input weights (once, outside the
    # kernel): tab[v] = emb[v] @ w_ih.T + (b_ih + b_hh).  Shape (V, 4H).
    hi = lax.Precision.HIGHEST
    tab_f = jnp.dot(emb, w_ih_f.T, precision=hi) + (b_ih_f + b_hh_f)[None, :]
    tab_b = jnp.dot(emb, w_ih_b.T, precision=hi) + (b_ih_b + b_hh_b)[None, :]

    # Pack everything into ONE (128, 256) f32 array -> single HBM->VMEM DMA.
    V, H = VOCAB, HIDDEN
    packed = jnp.zeros((PACK_ROWS, PACK_COLS), jnp.float32)
    packed = packed.at[0:V, 0:H4].set(tab_f)
    packed = packed.at[0:V, H4:2 * H4].set(tab_b)
    packed = packed.at[V:V + H, 0:H4].set(w_hh_f.T)
    packed = packed.at[V:V + H, H4:H4 + OUT_DIM].set(w_out[:, :H].T)        # W_f
    packed = packed.at[V + H:V + 2 * H, 0:OUT_DIM].set(w_out[:, H:2 * H].T)  # W_b
    packed = packed.at[V + H, H4:H4 + OUT_DIM].set(b_out)

    # Raw PyTorch-layout params for the pure-JAX reference check.
    raw = (emb, w_ih_f, w_hh_f, b_ih_f, b_hh_f,
           w_ih_b, w_hh_b, b_ih_b, b_hh_b, w_out, b_out)
    return packed, raw


# ------------------------- pure-JAX reference ------------------------------
def reference_forward(x, raw):
    (emb, w_ih_f, w_hh_f, b_ih_f, b_hh_f,
     w_ih_b, w_hh_b, b_ih_b, b_hh_b, w_out, b_out) = raw
    hi = lax.Precision.HIGHEST
    xe = emb[x]                                   # (S, B, E)
    H = HIDDEN

    def cell(x_t, h, c, w_ih, w_hh, b_ih, b_hh):
        g = (jnp.dot(x_t, w_ih.T, precision=hi)
             + jnp.dot(h, w_hh.T, precision=hi) + b_ih + b_hh)
        i = jax.nn.sigmoid(g[:, 0:H])
        f = jax.nn.sigmoid(g[:, H:2 * H])
        gg = jnp.tanh(g[:, 2 * H:3 * H])
        o = jax.nn.sigmoid(g[:, 3 * H:4 * H])
        c = f * c + i * gg
        h = o * jnp.tanh(c)
        return h, c

    def run(seq, w_ih, w_hh, b_ih, b_hh):
        def step(carry, x_t):
            h, c = carry
            h, c = cell(x_t, h, c, w_ih, w_hh, b_ih, b_hh)
            return (h, c), h
        init = (jnp.zeros((seq.shape[1], H)), jnp.zeros((seq.shape[1], H)))
        _, hs = lax.scan(step, init, seq)
        return hs                                  # (S, B, H)

    hs_f = run(xe, w_ih_f, w_hh_f, b_ih_f, b_hh_f)
    hs_b = run(xe[::-1], w_ih_b, w_hh_b, b_ih_b, b_hh_b)[::-1]
    h_last = jnp.concatenate([hs_f[-1], hs_b[-1]], axis=-1)   # output[-1]
    # Dropout(0.4) is identity at inference.
    return jnp.dot(h_last, w_out.T, precision=hi) + b_out


if __name__ == "__main__":
    key = jax.random.PRNGKey(0)
    kx, kp = jax.random.split(key)
    x = jax.random.randint(kx, (SEQ, BATCH), 0, VOCAB, dtype=jnp.int32)

    w_packed, raw = make_params(kp)

    out = jax.jit(bilstm_forward)(x, w_packed)
    out = jax.block_until_ready(out)

    ref = reference_forward(x, raw)
    assert out.shape == (BATCH, OUT_DIM)
    err = jnp.max(jnp.abs(out - ref))
    assert jnp.allclose(out, ref, atol=1e-4, rtol=1e-4), f"max diff {err}"

    print("KERNEL_OK")
</pallas_src>

<mosaic_0001>
module attributes {stable_mosaic.version = 11 : i64} {
  func.func @bilstm_kernel(%arg0: memref<64x1xi32, #tpu.memory_space<vmem>>, %arg1: memref<128x256xf32, #tpu.memory_space<vmem>>, %arg2: memref<8x128xf32, #tpu.memory_space<vmem>>) attributes {dimension_semantics = [], scalar_prefetch = 0 : i64, scratch_operands = 0 : i64, tpu.core_type = #tpu.core_type<tc>} {
    %c0 = arith.constant 0 : index
    %c0_0 = arith.constant 0 : index
    %0 = vector.load %arg0[%c0, %c0_0] : memref<64x1xi32, #tpu.memory_space<vmem>>, vector<64x1xi32>
    %1 = tpu.iota {dimensions = array<i32: 1>} : vector<64x64xi32>
    %2 = vector.broadcast %0 : vector<64x1xi32> to vector<64x64xi32>
    %3 = arith.cmpi eq, %2, %1 : vector<64x64xi32>
    %4 = arith.extui %3 : vector<64x64xi1> to vector<64x64xi32>
    %5 = arith.sitofp %4 : vector<64x64xi32> to vector<64x64xf32>
    %c0_1 = arith.constant 0 : index
    %c0_2 = arith.constant 0 : index
    %6 = vector.load %arg1[%c0_1, %c0_2] : memref<128x256xf32, #tpu.memory_space<vmem>>, vector<64x256xf32>
    %cst = arith.constant dense<0.000000e+00> : vector<64x256xf32>
    %7 = tpu.matmul %5, %6, %cst {dimension_numbers = #tpu.dot_dimension_numbers<[1], [0], [0], [1], [0, 0, 1, 1], [], []>} : vector<64x64xf32>, vector<64x256xf32>, vector<64x256xf32> -> vector<64x256xf32>
    %8 = vector.extract_strided_slice %7 {offsets = [0, 0], sizes = [64, 128], strides = [1, 1]} : vector<64x256xf32> to vector<64x128xf32>
    %9 = vector.extract_strided_slice %7 {offsets = [56, 128], sizes = [8, 128], strides = [1, 1]} : vector<64x256xf32> to vector<8x128xf32>
    %c64 = arith.constant 64 : index
    %c0_3 = arith.constant 0 : index
    %10 = vector.load %arg1[%c64, %c0_3] : memref<128x256xf32, #tpu.memory_space<vmem>>, vector<32x128xf32>
    %c64_4 = arith.constant 64 : index
    %c128 = arith.constant 128 : index
    %11 = vector.load %arg1[%c64_4, %c128] : memref<128x256xf32, #tpu.memory_space<vmem>>, vector<32x128xf32>
    %c96 = arith.constant 96 : index
    %c0_5 = arith.constant 0 : index
    %12 = vector.load %arg1[%c96, %c0_5] : memref<128x256xf32, #tpu.memory_space<vmem>>, vector<32x128xf32>
    %c96_6 = arith.constant 96 : index
    %c128_7 = arith.constant 128 : index
    %13 = vector.load %arg1[%c96_6, %c128_7] : memref<128x256xf32, #tpu.memory_space<vmem>>, vector<1x128xf32>
    %14 = arith.negf %9 : vector<8x128xf32>
    %15 = math.exp %14 : vector<8x128xf32>
    %cst_8 = arith.constant 1.000000e+00 : f32
    %16 = vector.broadcast %cst_8 : f32 to vector<8x128xf32>
    %17 = arith.addf %16, %15 : vector<8x128xf32>
    %18 = arith.divf %16, %17 : vector<8x128xf32>
    %19 = math.tanh %9 : vector<8x128xf32>
    %20 = vector.extract_strided_slice %18 {offsets = [0, 0], sizes = [8, 32], strides = [1, 1]} : vector<8x128xf32> to vector<8x32xf32>
    %21 = vector.extract_strided_slice %19 {offsets = [0, 64], sizes = [8, 32], strides = [1, 1]} : vector<8x128xf32> to vector<8x32xf32>
    %22 = vector.extract_strided_slice %18 {offsets = [0, 96], sizes = [8, 32], strides = [1, 1]} : vector<8x128xf32> to vector<8x32xf32>
    %23 = arith.mulf %20, %21 : vector<8x32xf32>
    %24 = math.tanh %23 : vector<8x32xf32>
    %25 = arith.mulf %22, %24 : vector<8x32xf32>
    %cst_9 = arith.constant dense<0.000000e+00> : vector<8x128xf32>
    %26 = tpu.matmul %25, %12, %cst_9 {dimension_numbers = #tpu.dot_dimension_numbers<[1], [0], [0], [1], [0, 0, 1, 1], [], []>} : vector<8x32xf32>, vector<32x128xf32>, vector<8x128xf32> -> vector<8x128xf32>
    %27 = vector.broadcast %13 : vector<1x128xf32> to vector<8x128xf32>
    %28 = arith.addf %26, %27 : vector<8x128xf32>
    %29 = vector.extract_strided_slice %8 {offsets = [0, 0], sizes = [8, 128], strides = [1, 1]} : vector<64x128xf32> to vector<8x128xf32>
    %30 = arith.negf %29 : vector<8x128xf32>
    %31 = math.exp %30 : vector<8x128xf32>
    %cst_10 = arith.constant 1.000000e+00 : f32
    %32 = vector.broadcast %cst_10 : f32 to vector<8x128xf32>
    %33 = arith.addf %32, %31 : vector<8x128xf32>
    %34 = arith.divf %32, %33 : vector<8x128xf32>
    %35 = math.tanh %29 : vector<8x128xf32>
    %36 = vector.extract_strided_slice %34 {offsets = [0, 0], sizes = [8, 32], strides = [1, 1]} : vector<8x128xf32> to vector<8x32xf32>
    %37 = vector.extract_strided_slice %35 {offsets = [0, 64], sizes = [8, 32], strides = [1, 1]} : vector<8x128xf32> to vector<8x32xf32>
    %38 = vector.extract_strided_slice %34 {offsets = [0, 96], sizes = [8, 32], strides = [1, 1]} : vector<8x128xf32> to vector<8x32xf32>
    %39 = arith.mulf %36, %37 : vector<8x32xf32>
    %40 = math.tanh %39 : vector<8x32xf32>
    %41 = arith.mulf %38, %40 : vector<8x32xf32>
    %42 = vector.extract_strided_slice %8 {offsets = [8, 0], sizes = [8, 128], strides = [1, 1]} : vector<64x128xf32> to vector<8x128xf32>
    %cst_11 = arith.constant dense<0.000000e+00> : vector<8x128xf32>
    %43 = tpu.matmul %41, %10, %cst_11 {dimension_numbers = #tpu.dot_dimension_numbers<[1], [0], [0], [1], [0, 0, 1, 1], [], []>} : vector<8x32xf32>, vector<32x128xf32>, vector<8x128xf32> -> vector<8x128xf32>
    %44 = arith.addf %42, %43 : vector<8x128xf32>
    %45 = arith.negf %44 : vector<8x128xf32>
    %46 = math.exp %45 : vector<8x128xf32>
    %cst_12 = arith.constant 1.000000e+00 : f32
    %47 = vector.broadcast %cst_12 : f32 to vector<8x128xf32>
    %48 = arith.addf %47, %46 : vector<8x128xf32>
    %49 = arith.divf %47, %48 : vector<8x128xf32>
    %50 = math.tanh %44 : vector<8x128xf32>
    %51 = vector.extract_strided_slice %49 {offsets = [0, 0], sizes = [8, 32], strides = [1, 1]} : vector<8x128xf32> to vector<8x32xf32>
    %52 = vector.extract_strided_slice %49 {offsets = [0, 32], sizes = [8, 32], strides = [1, 1]} : vector<8x128xf32> to vector<8x32xf32>
    %53 = vector.extract_strided_slice %50 {offsets = [0, 64], sizes = [8, 32], strides = [1, 1]} : vector<8x128xf32> to vector<8x32xf32>
    %54 = vector.extract_strided_slice %49 {offsets = [0, 96], sizes = [8, 32], strides = [1, 1]} : vector<8x128xf32> to vector<8x32xf32>
    %55 = arith.mulf %52, %39 : vector<8x32xf32>
    %56 = arith.mulf %51, %53 : vector<8x32xf32>
    %57 = arith.addf %55, %56 : vector<8x32xf32>
    %58 = math.tanh %57 : vector<8x32xf32>
    %59 = arith.mulf %54, %58 : vector<8x32xf32>
    %60 = vector.extract_strided_slice %8 {offsets = [16, 0], sizes = [8, 128], strides = [1, 1]} : vector<64x128xf32> to vector<8x128xf32>
    %cst_13 = arith.constant dense<0.000000e+00> : vector<8x128xf32>
    %61 = tpu.matmul %59, %10, %cst_13 {dimension_numbers = #tpu.dot_dimension_numbers<[1], [0], [0], [1], [0, 0, 1, 1], [], []>} : vector<8x32xf32>, vector<32x128xf32>, vector<8x128xf32> -> vector<8x128xf32>
    %62 = arith.addf %60, %61 : vector<8x128xf32>
    %63 = arith.negf %62 : vector<8x128xf32>
    %64 = math.exp %63 : vector<8x128xf32>
    %cst_14 = arith.constant 1.000000e+00 : f32
    %65 = vector.broadcast %cst_14 : f32 to vector<8x128xf32>
    %66 = arith.addf %65, %64 : vector<8x128xf32>
    %67 = arith.divf %65, %66 : vector<8x128xf32>
    %68 = math.tanh %62 : vector<8x128xf32>
    %69 = vector.extract_strided_slice %67 {offsets = [0, 0], sizes = [8, 32], strides = [1, 1]} : vector<8x128xf32> to vector<8x32xf32>
    %70 = vector.extract_strided_slice %67 {offsets = [0, 32], sizes = [8, 32], strides = [1, 1]} : vector<8x128xf32> to vector<8x32xf32>
    %71 = vector.extract_strided_slice %68 {offsets = [0, 64], sizes = [8, 32], strides = [1, 1]} : vector<8x128xf32> to vector<8x32xf32>
    %72 = vector.extract_strided_slice %67 {offsets = [0, 96], sizes = [8, 32], strides = [1, 1]} : vector<8x128xf32> to vector<8x32xf32>
    %73 = arith.mulf %70, %57 : vector<8x32xf32>
    %74 = arith.mulf %69, %71 : vector<8x32xf32>
    %75 = arith.addf %73, %74 : vector<8x32xf32>
    %76 = math.tanh %75 : vector<8x32xf32>
    %77 = arith.mulf %72, %76 : vector<8x32xf32>
    %78 = vector.extract_strided_slice %8 {offsets = [24, 0], sizes = [8, 128], strides = [1, 1]} : vector<64x128xf32> to vector<8x128xf32>
    %cst_15 = arith.constant dense<0.000000e+00> : vector<8x128xf32>
    %79 = tpu.matmul %77, %10, %cst_15 {dimension_numbers = #tpu.dot_dimension_numbers<[1], [0], [0], [1], [0, 0, 1, 1], [], []>} : vector<8x32xf32>, vector<32x128xf32>, vector<8x128xf32> -> vector<8x128xf32>
    %80 = arith.addf %78, %79 : vector<8x128xf32>
    %81 = arith.negf %80 : vector<8x128xf32>
    %82 = math.exp %81 : vector<8x128xf32>
    %cst_16 = arith.constant 1.000000e+00 : f32
    %83 = vector.broadcast %cst_16 : f32 to vector<8x128xf32>
    %84 = arith.addf %83, %82 : vector<8x128xf32>
    %85 = arith.divf %83, %84 : vector<8x128xf32>
    %86 = math.tanh %80 : vector<8x128xf32>
    %87 = vector.extract_strided_slice %85 {offsets = [0, 0], sizes = [8, 32], strides = [1, 1]} : vector<8x128xf32> to vector<8x32xf32>
    %88 = vector.extract_strided_slice %85 {offsets = [0, 32], sizes = [8, 32], strides = [1, 1]} : vector<8x128xf32> to vector<8x32xf32>
    %89 = vector.extract_strided_slice %86 {offsets = [0, 64], sizes = [8, 32], strides = [1, 1]} : vector<8x128xf32> to vector<8x32xf32>
    %90 = vector.extract_strided_slice %85 {offsets = [0, 96], sizes = [8, 32], strides = [1, 1]} : vector<8x128xf32> to vector<8x32xf32>
    %91 = arith.mulf %88, %75 : vector<8x32xf32>
    %92 = arith.mulf %87, %89 : vector<8x32xf32>
    %93 = arith.addf %91, %92 : vector<8x32xf32>
    %94 = math.tanh %93 : vector<8x32xf32>
    %95 = arith.mulf %90, %94 : vector<8x32xf32>
    %96 = vector.extract_strided_slice %8 {offsets = [32, 0], sizes = [8, 128], strides = [1, 1]} : vector<64x128xf32> to vector<8x128xf32>
    %cst_17 = arith.constant dense<0.000000e+00> : vector<8x128xf32>
    %97 = tpu.matmul %95, %10, %cst_17 {dimension_numbers = #tpu.dot_dimension_numbers<[1], [0], [0], [1], [0, 0, 1, 1], [], []>} : vector<8x32xf32>, vector<32x128xf32>, vector<8x128xf32> -> vector<8x128xf32>
    %98 = arith.addf %96, %97 : vector<8x128xf32>
    %99 = arith.negf %98 : vector<8x128xf32>
    %100 = math.exp %99 : vector<8x128xf32>
    %cst_18 = arith.constant 1.000000e+00 : f32
    %101 = vector.broadcast %cst_18 : f32 to vector<8x128xf32>
    %102 = arith.addf %101, %100 : vector<8x128xf32>
    %103 = arith.divf %101, %102 : vector<8x128xf32>
    %104 = math.tanh %98 : vector<8x128xf32>
    %105 = vector.extract_strided_slice %103 {offsets = [0, 0], sizes = [8, 32], strides = [1, 1]} : vector<8x128xf32> to vector<8x32xf32>
    %106 = vector.extract_strided_slice %103 {offsets = [0, 32], sizes = [8, 32], strides = [1, 1]} : vector<8x128xf32> to vector<8x32xf32>
    %107 = vector.extract_strided_slice %104 {offsets = [0, 64], sizes = [8, 32], strides = [1, 1]} : vector<8x128xf32> to vector<8x32xf32>
    %108 = vector.extract_strided_slice %103 {offsets = [0, 96], sizes = [8, 32], strides = [1, 1]} : vector<8x128xf32> to vector<8x32xf32>
    %109 = arith.mulf %106, %93 : vector<8x32xf32>
    %110 = arith.mulf %105, %107 : vector<8x32xf32>
    %111 = arith.addf %109, %110 : vector<8x32xf32>
    %112 = math.tanh %111 : vector<8x32xf32>
    %113 = arith.mulf %108, %112 : vector<8x32xf32>
    %114 = vector.extract_strided_slice %8 {offsets = [40, 0], sizes = [8, 128], strides = [1, 1]} : vector<64x128xf32> to vector<8x128xf32>
    %cst_19 = arith.constant dense<0.000000e+00> : vector<8x128xf32>
    %115 = tpu.matmul %113, %10, %cst_19 {dimension_numbers = #tpu.dot_dimension_numbers<[1], [0], [0], [1], [0, 0, 1, 1], [], []>} : vector<8x32xf32>, vector<32x128xf32>, vector<8x128xf32> -> vector<8x128xf32>
    %116 = arith.addf %114, %115 : vector<8x128xf32>
    %117 = arith.negf %116 : vector<8x128xf32>
    %118 = math.exp %117 : vector<8x128xf32>
    %cst_20 = arith.constant 1.000000e+00 : f32
    %119 = vector.broadcast %cst_20 : f32 to vector<8x128xf32>
    %120 = arith.addf %119, %118 : vector<8x128xf32>
    %121 = arith.divf %119, %120 : vector<8x128xf32>
    %122 = math.tanh %116 : vector<8x128xf32>
    %123 = vector.extract_strided_slice %121 {offsets = [0, 0], sizes = [8, 32], strides = [1, 1]} : vector<8x128xf32> to vector<8x32xf32>
    %124 = vector.extract_strided_slice %121 {offsets = [0, 32], sizes = [8, 32], strides = [1, 1]} : vector<8x128xf32> to vector<8x32xf32>
    %125 = vector.extract_strided_slice %122 {offsets = [0, 64], sizes = [8, 32], strides = [1, 1]} : vector<8x128xf32> to vector<8x32xf32>
    %126 = vector.extract_strided_slice %121 {offsets = [0, 96], sizes = [8, 32], strides = [1, 1]} : vector<8x128xf32> to vector<8x32xf32>
    %127 = arith.mulf %124, %111 : vector<8x32xf32>
    %128 = arith.mulf %123, %125 : vector<8x32xf32>
    %129 = arith.addf %127, %128 : vector<8x32xf32>
    %130 = math.tanh %129 : vector<8x32xf32>
    %131 = arith.mulf %126, %130 : vector<8x32xf32>
    %132 = vector.extract_strided_slice %8 {offsets = [48, 0], sizes = [8, 128], strides = [1, 1]} : vector<64x128xf32> to vector<8x128xf32>
    %cst_21 = arith.constant dense<0.000000e+00> : vector<8x128xf32>
    %133 = tpu.matmul %131, %10, %cst_21 {dimension_numbers = #tpu.dot_dimension_numbers<[1], [0], [0], [1], [0, 0, 1, 1], [], []>} : vector<8x32xf32>, vector<32x128xf32>, vector<8x128xf32> -> vector<8x128xf32>
    %134 = arith.addf %132, %133 : vector<8x128xf32>
    %135 = arith.negf %134 : vector<8x128xf32>
    %136 = math.exp %135 : vector<8x128xf32>
    %cst_22 = arith.constant 1.000000e+00 : f32
    %137 = vector.broadcast %cst_22 : f32 to vector<8x128xf32>
    %138 = arith.addf %137, %136 : vector<8x128xf32>
    %139 = arith.divf %137, %138 : vector<8x128xf32>
    %140 = math.tanh %134 : vector<8x128xf32>
    %141 = vector.extract_strided_slice %139 {offsets = [0, 0], sizes = [8, 32], strides = [1, 1]} : vector<8x128xf32> to vector<8x32xf32>
    %142 = vector.extract_strided_slice %139 {offsets = [0, 32], sizes = [8, 32], strides = [1, 1]} : vector<8x128xf32> to vector<8x32xf32>
    %143 = vector.extract_strided_slice %140 {offsets = [0, 64], sizes = [8, 32], strides = [1, 1]} : vector<8x128xf32> to vector<8x32xf32>
    %144 = vector.extract_strided_slice %139 {offsets = [0, 96], sizes = [8, 32], strides = [1, 1]} : vector<8x128xf32> to vector<8x32xf32>
    %145 = arith.mulf %142, %129 : vector<8x32xf32>
    %146 = arith.mulf %141, %143 : vector<8x32xf32>
    %147 = arith.addf %145, %146 : vector<8x32xf32>
    %148 = math.tanh %147 : vector<8x32xf32>
    %149 = arith.mulf %144, %148 : vector<8x32xf32>
    %150 = vector.extract_strided_slice %8 {offsets = [56, 0], sizes = [8, 128], strides = [1, 1]} : vector<64x128xf32> to vector<8x128xf32>
    %cst_23 = arith.constant dense<0.000000e+00> : vector<8x128xf32>
    %151 = tpu.matmul %149, %10, %cst_23 {dimension_numbers = #tpu.dot_dimension_numbers<[1], [0], [0], [1], [0, 0, 1, 1], [], []>} : vector<8x32xf32>, vector<32x128xf32>, vector<8x128xf32> -> vector<8x128xf32>
    %152 = arith.addf %150, %151 : vector<8x128xf32>
    %153 = arith.negf %152 : vector<8x128xf32>
    %154 = math.exp %153 : vector<8x128xf32>
    %cst_24 = arith.constant 1.000000e+00 : f32
    %155 = vector.broadcast %cst_24 : f32 to vector<8x128xf32>
    %156 = arith.addf %155, %154 : vector<8x128xf32>
    %157 = arith.divf %155, %156 : vector<8x128xf32>
    %158 = math.tanh %152 : vector<8x128xf32>
    %159 = vector.extract_strided_slice %157 {offsets = [0, 0], sizes = [8, 32], strides = [1, 1]} : vector<8x128xf32> to vector<8x32xf32>
    %160 = vector.extract_strided_slice %157 {offsets = [0, 32], sizes = [8, 32], strides = [1, 1]} : vector<8x128xf32> to vector<8x32xf32>
    %161 = vector.extract_strided_slice %158 {offsets = [0, 64], sizes = [8, 32], strides = [1, 1]} : vector<8x128xf32> to vector<8x32xf32>
    %162 = vector.extract_strided_slice %157 {offsets = [0, 96], sizes = [8, 32], strides = [1, 1]} : vector<8x128xf32> to vector<8x32xf32>
    %163 = arith.mulf %160, %147 : vector<8x32xf32>
    %164 = arith.mulf %159, %161 : vector<8x32xf32>
    %165 = arith.addf %163, %164 : vector<8x32xf32>
    %166 = math.tanh %165 : vector<8x32xf32>
    %167 = arith.mulf %162, %166 : vector<8x32xf32>
    %cst_25 = arith.constant dense<0.000000e+00> : vector<8x128xf32>
    %168 = tpu.matmul %167, %11, %cst_25 {dimension_numbers = #tpu.dot_dimension_numbers<[1], [0], [0], [1], [0, 0, 1, 1], [], []>} : vector<8x32xf32>, vector<32x128xf32>, vector<8x128xf32> -> vector<8x128xf32>
    %169 = arith.addf %168, %28 : vector<8x128xf32>
    %c0_26 = arith.constant 0 : index
    %c0_27 = arith.constant 0 : index
    %170 = vector.load %arg2[%c0_26, %c0_27] : memref<8x128xf32, #tpu.memory_space<vmem>>, vector<8x128xf32>
    tpu.vector_store %arg2[%c0_26, %c0_27], %169 {strides = array<i32>} : memref<8x128xf32, #tpu.memory_space<vmem>>, vector<8x128xf32>,
    return
  }
}

</mosaic_0001>

<llo_original>
// kernel: bilstm_forward.1
$region0: #{bilstm_forward.1}
  #allocation0 [shape = 'u32[]', space=smem, size = 0x4, offset = 0x4, fixed_abs, tag = 'smem constant byte address 0x4 - core index']
  #allocation1 [shape = 'u32[144,128]{1,0:T(1,128)}', space=vmem, size = 0x12000, scoped, tag = 'internal scratch']
  %s0 = inlined_call_operand.vmem [shape: s32[64,1], index: 0, kind: input, shape index: {}]
  %s1 = inlined_call_operand.hbm [shape: f32[128,256], index: 1, kind: input, shape index: {}]
  %s2 = inlined_call_operand.hbm [shape: f32[8,128], index: 2, kind: output, shape index: {}]
  %s3 = sld [smem:[#allocation0]]
  $region22: #{bilstm_forward.1} parent=0
    _
  %s5 = ssub.s32 1, %s3
  %s6 = scalar_select 0, %s5, %s3
  $region1: #{bilstm_forward.1} parent=0
    #allocation2 [shape = 'u8[131072]{0}', space=vmem, size = 0x20000, scoped, tag = 'input window, operand 1, single buffered']
    #allocation3 [shape = 's32[1]{0}', space=sflag, size = 0x4, scoped, tag = 'scoped memory for bilstm_forward.1']
    #allocation4 [shape = 's32[1]{0}', space=sflag, size = 0x4, scoped, tag = 'scoped memory for bilstm_forward.1']
    #allocation5 [shape = 'u8[4096]{0}', space=vmem, size = 0x1000, scoped, tag = 'output window, operand 0, single buffered']
    %7 = vsyncpa [#allocation3], 0
    %8 = vsyncpa [#allocation4], 0
    // Predicated region
    $region2: #{bilstm_forward.1} parent=1 // pred_check
      _
    $region3: #{bilstm_forward.1} parent=1 // pred_check_branch
      %10 = sbr.rel (0) target = $region5
    $region4: #{bilstm_forward.1} parent=1 // pred_region
      _
    $region5: #{bilstm_forward.1} parent=1 // pred_fallthru
      _
    // Predicated region
    $region6: #{bilstm_forward.1} parent=1 // pred_check
      _
    $region7: #{bilstm_forward.1} parent=1 // pred_check_branch
      %12 = sbr.rel (0) target = $region9
    $region8: #{bilstm_forward.1} parent=1 // pred_region
      %s14 = ssub.s32 4096, 4096
      %15 = vsyncadd [#allocation3], %s14
      %s16 = sshll.u32 [#allocation2], 4
      %s17 = int_to_ptr.vmem [resolvable:$true] %s16
      %22 = dma.hbm_to_vmem [thread:$0]  %s1, 4096, %s17, [#allocation3], 256, 256, 16
    $region9: #{bilstm_forward.1} parent=1 // pred_fallthru
      _
    // Predicated region
    $region10: #{bilstm_forward.1} parent=1 // pred_check
      _
    $region11: #{bilstm_forward.1} parent=1 // pred_check_branch
      %24 = sbr.rel (0) target = $region13
    $region12: #{bilstm_forward.1} parent=1 // pred_region
      %25 = dma.done [#allocation3], 4096
    $region13: #{bilstm_forward.1} parent=1 // pred_fallthru
      _
    %v26 = vld [vmem:[%s0] sm:$0xff]
    %v27 = vld [vmem:[%s0 + $0x8] sm:$0xff]
    %v28 = vld [vmem:[%s0 + $0x10] sm:$0xff]
    %v29 = vld [vmem:[%s0 + $0x18] sm:$0xff]
    %v30 = vld [vmem:[%s0 + $0x20] sm:$0xff]
    %v31 = vld [vmem:[%s0 + $0x28] sm:$0xff]
    %v32 = vld [vmem:[%s0 + $0x30] sm:$0xff]
    %v33 = vld [vmem:[%s0 + $0x38] sm:$0xff]
    %v34 = vlaneseq
    %v35 = vand.u32 %v34, 127
    %36 = vset.pattern.permute.xlu0 0
    %37 = vperm.xlu0 %36, %v26
    %v38 = vpop.permute.xlu0 %37
    %39 = vset.pattern.permute.xlu0 0
    %40 = vperm.xlu0 %39, %v27
    %v41 = vpop.permute.xlu0 %40
    %42 = vset.pattern.permute.xlu0 0
    %43 = vperm.xlu0 %42, %v28
    %v44 = vpop.permute.xlu0 %43
    %45 = vset.pattern.permute.xlu0 0
    %46 = vperm.xlu0 %45, %v29
    %v47 = vpop.permute.xlu0 %46
    %48 = vset.pattern.permute.xlu0 0
    %49 = vperm.xlu0 %48, %v30
    %v50 = vpop.permute.xlu0 %49
    %51 = vset.pattern.permute.xlu0 0
    %52 = vperm.xlu0 %51, %v31
    %v53 = vpop.permute.xlu0 %52
    %54 = vset.pattern.permute.xlu0 0
    %55 = vperm.xlu0 %54, %v32
    %v56 = vpop.permute.xlu0 %55
    %57 = vset.pattern.permute.xlu0 0
    %58 = vperm.xlu0 %57, %v33
    %v59 = vpop.permute.xlu0 %58
    %vm60 = vcmp.eq.s32.totalorder %v38, %v35
    %vm61 = vcmp.eq.s32.totalorder %v41, %v35
    %vm62 = vcmp.eq.s32.totalorder %v44, %v35
    %vm63 = vcmp.eq.s32.totalorder %v47, %v35
    %vm64 = vcmp.eq.s32.totalorder %v50, %v35
    %vm65 = vcmp.eq.s32.totalorder %v53, %v35
    %vm66 = vcmp.eq.s32.totalorder %v56, %v35
    %vm67 = vcmp.eq.s32.totalorder %v59, %v35
    %v68 = vsel %vm60, 1, 0
    %v69 = vsel %vm61, 1, 0
    %v70 = vsel %vm62, 1, 0
    %v71 = vsel %vm63, 1, 0
    %v72 = vsel %vm64, 1, 0
    %v73 = vsel %vm65, 1, 0
    %v74 = vsel %vm66, 1, 0
    %v75 = vsel %vm67, 1, 0
    %v76 = vcvt.s32.f32 %v68
    %v77 = vcvt.s32.f32 %v69
    %v78 = vcvt.s32.f32 %v70
    %v79 = vcvt.s32.f32 %v71
    %v80 = vcvt.s32.f32 %v72
    %v81 = vcvt.s32.f32 %v73
    %v82 = vcvt.s32.f32 %v74
    %v83 = vcvt.s32.f32 %v75
    %v84 = vld [vmem:[#allocation2] sm:$0xff]
    %v85 = vld [vmem:[#allocation2 + $0x8] sm:$0xff]
    %v86 = vld [vmem:[#allocation2 + $0x10] sm:$0xff]
    %v87 = vld [vmem:[#allocation2 + $0x18] sm:$0xff]
    %v88 = vld [vmem:[#allocation2 + $0x20] sm:$0xff]
    %v89 = vld [vmem:[#allocation2 + $0x28] sm:$0xff]
    %v90 = vld [vmem:[#allocation2 + $0x30] sm:$0xff]
    %v91 = vld [vmem:[#allocation2 + $0x38] sm:$0xff]
    %v92 = vld [vmem:[#allocation2 + $0x40] sm:$0xff]
    %v93 = vld [vmem:[#allocation2 + $0x48] sm:$0xff]
    %v94 = vld [vmem:[#allocation2 + $0x50] sm:$0xff]
    %v95 = vld [vmem:[#allocation2 + $0x58] sm:$0xff]
    %v96 = vld [vmem:[#allocation2 + $0x60] sm:$0xff]
    %v97 = vld [vmem:[#allocation2 + $0x68] sm:$0xff]
    %v98 = vld [vmem:[#allocation2 + $0x70] sm:$0xff]
    %v99 = vld [vmem:[#allocation2 + $0x78] sm:$0xff]
    %vm100 = vcmask 523264
    %v102 = vsel %vm100, %v76, 0
    %v105 = vsel %vm100, %v77, 0
    %v108 = vsel %vm100, %v78, 0
    %v111 = vsel %vm100, %v79, 0
    %v114 = vsel %vm100, %v80, 0
    %v117 = vsel %vm100, %v81, 0
    %v120 = vsel %vm100, %v82, 0
    %v123 = vsel %vm100, %v83, 0
    %125 = vmatprep.subr.mxu0 %v85
    %126 = vmatpush1.msra.mxu0 %v84
    %127 = vmatprep.subr.mxu0 %v87
    %128 = vmatpush1.msra.mxu0 %v86
    %129 = vmatprep.subr.mxu0 %v89
    %130 = vmatpush1.msra.mxu0 %v88
    %131 = vmatprep.subr.mxu0 %v91
    %132 = vmatpush1.msra.mxu0 %v90
    %133 = vmatprep.subr.mxu0 %v93
    %134 = vmatpush1.msra.mxu0 %v92
    %135 = vmatprep.subr.mxu0 %v95
    %136 = vmatpush1.msra.mxu0 %v94
    %137 = vmatprep.subr.mxu0 %v97
    %138 = vmatpush1.msra.mxu0 %v96
    %139 = vmatprep.subr.mxu0 %v99
    %140 = vmatpush1.msra.mxu0 %v98
    %141 = vmatprep.subr.mxu0 0.0
    %142 = vmatpush1.msra.mxu0 0.0
    %143 = vmatprep.subr.mxu0 0.0
    %144 = vmatpush1.msra.mxu0 0.0
    %145 = vmatprep.subr.mxu0 0.0
    %146 = vmatpush1.msra.mxu0 0.0
    %147 = vmatprep.subr.mxu0 0.0
    %148 = vmatpush1.msra.mxu0 0.0
    %149 = vmatprep.subr.mxu0 0.0
    %150 = vmatpush1.msra.mxu0 0.0
    %151 = vmatprep.subr.mxu0 0.0
    %152 = vmatpush1.msra.mxu0 0.0
    %153 = vmatprep.subr.mxu0 0.0
    %154 = vmatpush1.msra.mxu0 0.0
    %155 = vmatprep.subr.mxu0 0.0
    %156 = vmatpush1.msra.mxu0 0.0
    %157 = vmatprep.subr.mxu0 0.0
    %158 = vmatpush1.msra.mxu0 0.0
    %159 = vmatprep.subr.mxu0 0.0
    %160 = vmatpush1.msra.mxu0 0.0
    %161 = vmatprep.subr.mxu0 0.0
    %162 = vmatpush1.msra.mxu0 0.0
    %163 = vmatprep.subr.mxu0 0.0
    %164 = vmatpush1.msra.mxu0 0.0
    %165 = vmatprep.subr.mxu0 0.0
    %166 = vmatpush1.msra.mxu0 0.0
    %167 = vmatprep.subr.mxu0 0.0
    %168 = vmatpush1.msra.mxu0 0.0
    %169 = vmatprep.subr.mxu0 0.0
    %170 = vmatpush1.msra.mxu0 0.0
    %171 = vmatprep.subr.mxu0 0.0
    %172 = vmatpush1.msra.mxu0 0.0
    %173 = vmatprep.subr.mxu0 0.0
    %174 = vmatpush1.msra.mxu0 0.0
    %175 = vmatprep.subr.mxu0 0.0
    %176 = vmatpush1.msra.mxu0 0.0
    %177 = vmatprep.subr.mxu0 0.0
    %178 = vmatpush1.msra.mxu0 0.0
    %179 = vmatprep.subr.mxu0 0.0
    %180 = vmatpush1.msra.mxu0 0.0
    %181 = vmatprep.subr.mxu0 0.0
    %182 = vmatpush1.msra.mxu0 0.0
    %183 = vmatprep.subr.mxu0 0.0
    %184 = vmatpush1.msra.mxu0 0.0
    %185 = vmatprep.subr.mxu0 0.0
    %186 = vmatpush1.msra.mxu0 0.0
    %187 = vmatprep.subr.mxu0 0.0
    %188 = vmatpush1.msra.mxu0 0.0
    %189 = vmatprep.mubr.f32.mxu0 0.0
    %190 = vmatmul.mubr.f32.gmra.mrb[0].mxu0 %v102
    %v191 = vpop.f32.mrb[0].mxu0
    %v192 = vadd.f32 0.0, %v191
    %v193 = vpop.f32.mrb[0].mxu0
    %194 = vmatprep.mubr.f32.mxu0 0.0
    %195 = vmatmul.mubr.f32.gmra.mrb[0].mxu0 %v105
    %v196 = vpop.f32.mrb[0].mxu0
    %v197 = vadd.f32 0.0, %v196
    %v198 = vpop.f32.mrb[0].mxu0
    %199 = vmatprep.mubr.f32.mxu0 0.0
    %200 = vmatmul.mubr.f32.gmra.mrb[0].mxu0 %v108
    %v201 = vpop.f32.mrb[0].mxu0
    %v202 = vadd.f32 0.0, %v201
    %v203 = vpop.f32.mrb[0].mxu0
    %204 = vmatprep.mubr.f32.mxu0 0.0
    %205 = vmatmul.mubr.f32.gmra.mrb[0].mxu0 %v111
    %v206 = vpop.f32.mrb[0].mxu0
    %v207 = vadd.f32 0.0, %v206
    %v208 = vpop.f32.mrb[0].mxu0
    %209 = vmatprep.mubr.f32.mxu0 0.0
    %210 = vmatmul.mubr.f32.gmra.mrb[0].mxu0 %v114
    %v211 = vpop.f32.mrb[0].mxu0
    %v212 = vadd.f32 0.0, %v211
    %v213 = vpop.f32.mrb[0].mxu0
    %214 = vmatprep.mubr.f32.mxu0 0.0
    %215 = vmatmul.mubr.f32.gmra.mrb[0].mxu0 %v117
    %v216 = vpop.f32.mrb[0].mxu0
    %v217 = vadd.f32 0.0, %v216
    %v218 = vpop.f32.mrb[0].mxu0
    %219 = vmatprep.mubr.f32.mxu0 0.0
    %220 = vmatmul.mubr.f32.gmra.mrb[0].mxu0 %v120
    %v221 = vpop.f32.mrb[0].mxu0
    %v222 = vadd.f32 0.0, %v221
    %v223 = vpop.f32.mrb[0].mxu0
    %224 = vmatprep.mubr.f32.mxu0 0.0
    %225 = vmatmul.mubr.f32.gmra.mrb[0].mxu0 %v123
    %v226 = vpop.f32.mrb[0].mxu0
    %v227 = vadd.f32 0.0, %v226
    %v228 = vpop.f32.mrb[0].mxu0
    %v229 = vadd.f32 0.0, %v228
    %230 = vdwg.mxu0
    %v231 = vld [vmem:[#allocation2 + $0x80] sm:$0xff]
    %v232 = vld [vmem:[#allocation2 + $0x90] sm:$0xff]
    %v233 = vld [vmem:[#allocation2 + $0xa0] sm:$0xff]
    %v234 = vld [vmem:[#allocation2 + $0xb0] sm:$0xff]
    %v235 = vld [vmem:[#allocation2 + $0x88] sm:$0xff]
    %v236 = vld [vmem:[#allocation2 + $0x98] sm:$0xff]
    %v237 = vld [vmem:[#allocation2 + $0xa8] sm:$0xff]
    %v238 = vld [vmem:[#allocation2 + $0xb8] sm:$0xff]
    %v239 = vld [vmem:[#allocation2 + $0xc0] sm:$0xff]
    %v240 = vld [vmem:[#allocation2 + $0xd0] sm:$0xff]
    %v241 = vld [vmem:[#allocation2 + $0xe0] sm:$0xff]
    %v242 = vld [vmem:[#allocation2 + $0xf0] sm:$0xff]
    %v243 = vld [vmem:[#allocation2 + $0xc8] ss:$0 sm:$0xff]
    %v244 = vxor.u32 %v229, 2147483648
    %v245 = vmul.f32 %v244, 1.442695
    %v246 = vpow.pop %v245
    %v247 = vadd.f32 %v246, 1.0
    %v248 = vrcp.pop %v247
    %v249 = vmul.f32 1.0, %v248
    %v250 = vtanh.pop %v229
    %252 = vrot.lane.b32.xlu0 %v250, 64
    %v253 = vpop.permute.xlu0 %252
    %v255 = vmul.f32 %v249, %v253
    %v256 = vtanh.pop %v255
    %258 = vrot.lane.b32.xlu0 %v256, 96
    %v259 = vpop.permute.xlu0 %258
    %v261 = vmul.f32 %v249, %v259
    %263 = vrot.lane.b32.xlu0 %v261, 32
    %v264 = vpop.permute.xlu0 %263
    %vm265 = vcmask 261120
    %v266 = vsel %vm265, %v264, 0
    %268 = vmatprep.subr.mxu0 0.0
    %269 = vmatpush1.msra.mxu0 %v239
    %270 = vmatprep.subr.mxu0 0.0
    %271 = vmatpush1.msra.mxu0 %v240
    %272 = vmatprep.subr.mxu0 0.0
    %273 = vmatpush1.msra.mxu0 %v241
    %274 = vmatprep.subr.mxu0 0.0
    %275 = vmatpush1.msra.mxu0 %v242
    %276 = vmatprep.subr.mxu0 0.0
    %277 = vmatpush1.msra.mxu0 0.0
    %278 = vmatprep.subr.mxu0 0.0
    %279 = vmatpush1.msra.mxu0 0.0
    %280 = vmatprep.subr.mxu0 0.0
    %281 = vmatpush1.msra.mxu0 0.0
    %282 = vmatprep.subr.mxu0 0.0
    %283 = vmatpush1.msra.mxu0 0.0
    %284 = vmatprep.subr.mxu0 0.0
    %285 = vmatpush1.msra.mxu0 0.0
    %286 = vmatprep.subr.mxu0 0.0
    %287 = vmatpush1.msra.mxu0 0.0
    %288 = vmatprep.subr.mxu0 0.0
    %289 = vmatpush1.msra.mxu0 0.0
    %290 = vmatprep.subr.mxu0 0.0
    %291 = vmatpush1.msra.mxu0 0.0
    %292 = vmatprep.subr.mxu0 0.0
    %293 = vmatpush1.msra.mxu0 0.0
    %294 = vmatprep.subr.mxu0 0.0
    %295 = vmatpush1.msra.mxu0 0.0
    %296 = vmatprep.subr.mxu0 0.0
    %297 = vmatpush1.msra.mxu0 0.0
    %298 = vmatprep.subr.mxu0 0.0
    %299 = vmatpush1.msra.mxu0 0.0
    %300 = vmatprep.subr.mxu0 0.0
    %301 = vmatpush1.msra.mxu0 0.0
    %302 = vmatprep.subr.mxu0 0.0
    %303 = vmatpush1.msra.mxu0 0.0
    %304 = vmatprep.subr.mxu0 0.0
    %305 = vmatpush1.msra.mxu0 0.0
    %306 = vmatprep.subr.mxu0 0.0
    %307 = vmatpush1.msra.mxu0 0.0
    %308 = vmatprep.subr.mxu0 0.0
    %309 = vmatpush1.msra.mxu0 0.0
    %310 = vmatprep.subr.mxu0 0.0
    %311 = vmatpush1.msra.mxu0 0.0
    %312 = vmatprep.subr.mxu0 0.0
    %313 = vmatpush1.msra.mxu0 0.0
    %314 = vmatprep.subr.mxu0 0.0
    %315 = vmatpush1.msra.mxu0 0.0
    %316 = vmatprep.subr.mxu0 0.0
    %317 = vmatpush1.msra.mxu0 0.0
    %318 = vmatprep.subr.mxu0 0.0
    %319 = vmatpush1.msra.mxu0 0.0
    %320 = vmatprep.subr.mxu0 0.0
    %321 = vmatpush1.msra.mxu0 0.0
    %322 = vmatprep.subr.mxu0 0.0
    %323 = vmatpush1.msra.mxu0 0.0
    %324 = vmatprep.subr.mxu0 0.0
    %325 = vmatpush1.msra.mxu0 0.0
    %326 = vmatprep.subr.mxu0 0.0
    %327 = vmatpush1.msra.mxu0 0.0
    %328 = vmatprep.subr.mxu0 0.0
    %329 = vmatpush1.msra.mxu0 0.0
    %330 = vmatprep.subr.mxu0 0.0
    %331 = vmatpush1.msra.mxu0 0.0
    %332 = vmatprep.mubr.f32.mxu0 0.0
    %333 = vmatmul.mubr.f32.gmra.mrb[0].mxu0 %v266
    %v334 = vpop.f32.mrb[0].mxu0
    %v335 = vadd.f32 %v243, %v334
    %v336 = vpop.f32.mrb[0].mxu0
    %337 = vdwg.mxu0
    %v338 = vxor.u32 %v192, 2147483648
    %v339 = vmul.f32 %v338, 1.442695
    %v340 = vpow.pop %v339
    %v341 = vadd.f32 %v340, 1.0
    %v342 = vrcp.pop %v341
    %v343 = vmul.f32 1.0, %v342
    %v344 = vtanh.pop %v192
    %346 = vrot.lane.b32.xlu0 %v344, 64
    %v347 = vpop.permute.xlu0 %346
    %v349 = vmul.f32 %v343, %v347
    %v350 = vtanh.pop %v349
    %352 = vrot.lane.b32.xlu0 %v350, 96
    %v353 = vpop.permute.xlu0 %352
    %v355 = vmul.f32 %v343, %v353
    %357 = vrot.lane.b32.xlu0 %v355, 32
    %v358 = vpop.permute.xlu0 %357
    %v359 = vsel %vm265, %v358, 0
    %361 = vmatprep.subr.mxu0 0.0
    %362 = vmatpush1.msra.mxu0 %v231
    %363 = vmatprep.subr.mxu0 0.0
    %364 = vmatpush1.msra.mxu0 %v232
    %365 = vmatprep.subr.mxu0 0.0
    %366 = vmatpush1.msra.mxu0 %v233
    %367 = vmatprep.subr.mxu0 0.0
    %368 = vmatpush1.msra.mxu0 %v234
    %369 = vmatprep.subr.mxu0 0.0
    %370 = vmatpush1.msra.mxu0 0.0
    %371 = vmatprep.subr.mxu0 0.0
    %372 = vmatpush1.msra.mxu0 0.0
    %373 = vmatprep.subr.mxu0 0.0
    %374 = vmatpush1.msra.mxu0 0.0
    %375 = vmatprep.subr.mxu0 0.0
    %376 = vmatpush1.msra.mxu0 0.0
    %377 = vmatprep.subr.mxu0 0.0
    %378 = vmatpush1.msra.mxu0 0.0
    %379 = vmatprep.subr.mxu0 0.0
    %380 = vmatpush1.msra.mxu0 0.0
    %381 = vmatprep.subr.mxu0 0.0
    %382 = vmatpush1.msra.mxu0 0.0
    %383 = vmatprep.subr.mxu0 0.0
    %384 = vmatpush1.msra.mxu0 0.0
    %385 = vmatprep.subr.mxu0 0.0
    %386 = vmatpush1.msra.mxu0 0.0
    %387 = vmatprep.subr.mxu0 0.0
    %388 = vmatpush1.msra.mxu0 0.0
    %389 = vmatprep.subr.mxu0 0.0
    %390 = vmatpush1.msra.mxu0 0.0
    %391 = vmatprep.subr.mxu0 0.0
    %392 = vmatpush1.msra.mxu0 0.0
    %393 = vmatprep.subr.mxu0 0.0
    %394 = vmatpush1.msra.mxu0 0.0
    %395 = vmatprep.subr.mxu0 0.0
    %396 = vmatpush1.msra.mxu0 0.0
    %397 = vmatprep.subr.mxu0 0.0
    %398 = vmatpush1.msra.mxu0 0.0
    %399 = vmatprep.subr.mxu0 0.0
    %400 = vmatpush1.msra.mxu0 0.0
    %401 = vmatprep.subr.mxu0 0.0
    %402 = vmatpush1.msra.mxu0 0.0
    %403 = vmatprep.subr.mxu0 0.0
    %404 = vmatpush1.msra.mxu0 0.0
    %405 = vmatprep.subr.mxu0 0.0
    %406 = vmatpush1.msra.mxu0 0.0
    %407 = vmatprep.subr.mxu0 0.0
    %408 = vmatpush1.msra.mxu0 0.0
    %409 = vmatprep.subr.mxu0 0.0
    %410 = vmatpush1.msra.mxu0 0.0
    %411 = vmatprep.subr.mxu0 0.0
    %412 = vmatpush1.msra.mxu0 0.0
    %413 = vmatprep.subr.mxu0 0.0
    %414 = vmatpush1.msra.mxu0 0.0
    %415 = vmatprep.subr.mxu0 0.0
    %416 = vmatpush1.msra.mxu0 0.0
    %417 = vmatprep.subr.mxu0 0.0
    %418 = vmatpush1.msra.mxu0 0.0
    %419 = vmatprep.subr.mxu0 0.0
    %420 = vmatpush1.msra.mxu0 0.0
    %421 = vmatprep.subr.mxu0 0.0
    %422 = vmatpush1.msra.mxu0 0.0
    %423 = vmatprep.subr.mxu0 0.0
    %424 = vmatpush1.msra.mxu0 0.0
    %425 = vmatprep.mubr.f32.mxu0 0.0
    %426 = vmatmul.mubr.f32.gmra.mrb[0].mxu0 %v359
    %v427 = vpop.f32.mrb[0].mxu0
    %v428 = vadd.f32 0.0, %v427
    %v429 = vpop.f32.mrb[0].mxu0
    %430 = vdwg.mxu0
    %v431 = vadd.f32 %v197, %v428
    %v432 = vxor.u32 %v431, 2147483648
    %v433 = vmul.f32 %v432, 1.442695
    %v434 = vpow.pop %v433
    %v435 = vadd.f32 %v434, 1.0
    %v436 = vrcp.pop %v435
    %v437 = vmul.f32 1.0, %v436
    %v438 = vtanh.pop %v431
    %440 = vrot.lane.b32.xlu0 %v349, 32
    %v441 = vpop.permute.xlu0 %440
    %v443 = vmul.f32 %v437, %v441
    %445 = vrot.lane.b32.xlu0 %v438, 64
    %v446 = vpop.permute.xlu0 %445
    %v448 = vmul.f32 %v437, %v446
    %450 = vrot.lane.b32.xlu0 %v448, 32
    %v451 = vpop.permute.xlu0 %450
    %v453 = vadd.f32 %v443, %v451
    %v454 = vtanh.pop %v453
    %456 = vrot.lane.b32.xlu0 %v454, 64
    %v457 = vpop.permute.xlu0 %456
    %v459 = vmul.f32 %v437, %v457
    %461 = vrot.lane.b32.xlu0 %v459, 32
    %v462 = vpop.permute.xlu0 %461
    %v463 = vsel %vm265, %v462, 0
    %465 = vmatprep.subr.mxu0 0.0
    %466 = vmatpush1.msra.mxu0 %v231
    %467 = vmatprep.subr.mxu0 0.0
    %468 = vmatpush1.msra.mxu0 %v232
    %469 = vmatprep.subr.mxu0 0.0
    %470 = vmatpush1.msra.mxu0 %v233
    %471 = vmatprep.subr.mxu0 0.0
    %472 = vmatpush1.msra.mxu0 %v234
    %473 = vmatprep.subr.mxu0 0.0
    %474 = vmatpush1.msra.mxu0 0.0
    %475 = vmatprep.subr.mxu0 0.0
    %476 = vmatpush1.msra.mxu0 0.0
    %477 = vmatprep.subr.mxu0 0.0
    %478 = vmatpush1.msra.mxu0 0.0
    %479 = vmatprep.subr.mxu0 0.0
    %480 = vmatpush1.msra.mxu0 0.0
    %481 = vmatprep.subr.mxu0 0.0
    %482 = vmatpush1.msra.mxu0 0.0
    %483 = vmatprep.subr.mxu0 0.0
    %484 = vmatpush1.msra.mxu0 0.0
    %485 = vmatprep.subr.mxu0 0.0
    %486 = vmatpush1.msra.mxu0 0.0
    %487 = vmatprep.subr.mxu0 0.0
    %488 = vmatpush1.msra.mxu0 0.0
    %489 = vmatprep.subr.mxu0 0.0
    %490 = vmatpush1.msra.mxu0 0.0
    %491 = vmatprep.subr.mxu0 0.0
    %492 = vmatpush1.msra.mxu0 0.0
    %493 = vmatprep.subr.mxu0 0.0
    %494 = vmatpush1.msra.mxu0 0.0
    %495 = vmatprep.subr.mxu0 0.0
    %496 = vmatpush1.msra.mxu0 0.0
    %497 = vmatprep.subr.mxu0 0.0
    %498 = vmatpush1.msra.mxu0 0.0
    %499 = vmatprep.subr.mxu0 0.0
    %500 = vmatpush1.msra.mxu0 0.0
    %501 = vmatprep.subr.mxu0 0.0
    %502 = vmatpush1.msra.mxu0 0.0
    %503 = vmatprep.subr.mxu0 0.0
    %504 = vmatpush1.msra.mxu0 0.0
    %505 = vmatprep.subr.mxu0 0.0
    %506 = vmatpush1.msra.mxu0 0.0
    %507 = vmatprep.subr.mxu0 0.0
    %508 = vmatpush1.msra.mxu0 0.0
    %509 = vmatprep.subr.mxu0 0.0
    %510 = vmatpush1.msra.mxu0 0.0
    %511 = vmatprep.subr.mxu0 0.0
    %512 = vmatpush1.msra.mxu0 0.0
    %513 = vmatprep.subr.mxu0 0.0
    %514 = vmatpush1.msra.mxu0 0.0
    %515 = vmatprep.subr.mxu0 0.0
    %516 = vmatpush1.msra.mxu0 0.0
    %517 = vmatprep.subr.mxu0 0.0
    %518 = vmatpush1.msra.mxu0 0.0
    %519 = vmatprep.subr.mxu0 0.0
    %520 = vmatpush1.msra.mxu0 0.0
    %521 = vmatprep.subr.mxu0 0.0
    %522 = vmatpush1.msra.mxu0 0.0
    %523 = vmatprep.subr.mxu0 0.0
    %524 = vmatpush1.msra.mxu0 0.0
    %525 = vmatprep.subr.mxu0 0.0
    %526 = vmatpush1.msra.mxu0 0.0
    %527 = vmatprep.subr.mxu0 0.0
    %528 = vmatpush1.msra.mxu0 0.0
    %529 = vmatprep.mubr.f32.mxu0 0.0
    %530 = vmatmul.mubr.f32.gmra.mrb[0].mxu0 %v463
    %v531 = vpop.f32.mrb[0].mxu0
    %v532 = vadd.f32 0.0, %v531
    %v533 = vpop.f32.mrb[0].mxu0
    %534 = vdwg.mxu0
    %v535 = vadd.f32 %v202, %v532
    %v536 = vxor.u32 %v535, 2147483648
    %v537 = vmul.f32 %v536, 1.442695
    %v538 = vpow.pop %v537
    %v539 = vadd.f32 %v538, 1.0
    %v540 = vrcp.pop %v539
    %v541 = vmul.f32 1.0, %v540
    %v542 = vtanh.pop %v535
    %v543 = vmul.f32 %v541, %v453
    %545 = vrot.lane.b32.xlu0 %v542, 64
    %v546 = vpop.permute.xlu0 %545
    %v548 = vmul.f32 %v541, %v546
    %550 = vrot.lane.b32.xlu0 %v548, 32
    %v551 = vpop.permute.xlu0 %550
    %v553 = vadd.f32 %v543, %v551
    %v554 = vtanh.pop %v553
    %556 = vrot.lane.b32.xlu0 %v554, 64
    %v557 = vpop.permute.xlu0 %556
    %v559 = vmul.f32 %v541, %v557
    %561 = vrot.lane.b32.xlu0 %v559, 32
    %v562 = vpop.permute.xlu0 %561
    %v563 = vsel %vm265, %v562, 0
    %565 = vmatprep.subr.mxu0 0.0
    %566 = vmatpush1.msra.mxu0 %v231
    %567 = vmatprep.subr.mxu0 0.0
    %568 = vmatpush1.msra.mxu0 %v232
    %569 = vmatprep.subr.mxu0 0.0
    %570 = vmatpush1.msra.mxu0 %v233
    %571 = vmatprep.subr.mxu0 0.0
    %572 = vmatpush1.msra.mxu0 %v234
    %573 = vmatprep.subr.mxu0 0.0
    %574 = vmatpush1.msra.mxu0 0.0
    %575 = vmatprep.subr.mxu0 0.0
    %576 = vmatpush1.msra.mxu0 0.0
    %577 = vmatprep.subr.mxu0 0.0
    %578 = vmatpush1.msra.mxu0 0.0
    %579 = vmatprep.subr.mxu0 0.0
    %580 = vmatpush1.msra.mxu0 0.0
    %581 = vmatprep.subr.mxu0 0.0
    %582 = vmatpush1.msra.mxu0 0.0
    %583 = vmatprep.subr.mxu0 0.0
    %584 = vmatpush1.msra.mxu0 0.0
    %585 = vmatprep.subr.mxu0 0.0
    %586 = vmatpush1.msra.mxu0 0.0
    %587 = vmatprep.subr.mxu0 0.0
    %588 = vmatpush1.msra.mxu0 0.0
    %589 = vmatprep.subr.mxu0 0.0
    %590 = vmatpush1.msra.mxu0 0.0
    %591 = vmatprep.subr.mxu0 0.0
    %592 = vmatpush1.msra.mxu0 0.0
    %593 = vmatprep.subr.mxu0 0.0
    %594 = vmatpush1.msra.mxu0 0.0
    %595 = vmatprep.subr.mxu0 0.0
    %596 = vmatpush1.msra.mxu0 0.0
    %597 = vmatprep.subr.mxu0 0.0
    %598 = vmatpush1.msra.mxu0 0.0
    %599 = vmatprep.subr.mxu0 0.0
    %600 = vmatpush1.msra.mxu0 0.0
    %601 = vmatprep.subr.mxu0 0.0
    %602 = vmatpush1.msra.mxu0 0.0
    %603 = vmatprep.subr.mxu0 0.0
    %604 = vmatpush1.msra.mxu0 0.0
    %605 = vmatprep.subr.mxu0 0.0
    %606 = vmatpush1.msra.mxu0 0.0
    %607 = vmatprep.subr.mxu0 0.0
    %608 = vmatpush1.msra.mxu0 0.0
    %609 = vmatprep.subr.mxu0 0.0
    %610 = vmatpush1.msra.mxu0 0.0
    %611 = vmatprep.subr.mxu0 0.0
    %612 = vmatpush1.msra.mxu0 0.0
    %613 = vmatprep.subr.mxu0 0.0
    %614 = vmatpush1.msra.mxu0 0.0
    %615 = vmatprep.subr.mxu0 0.0
    %616 = vmatpush1.msra.mxu0 0.0
    %617 = vmatprep.subr.mxu0 0.0
    %618 = vmatpush1.msra.mxu0 0.0
    %619 = vmatprep.subr.mxu0 0.0
    %620 = vmatpush1.msra.mxu0 0.0
    %621 = vmatprep.subr.mxu0 0.0
    %622 = vmatpush1.msra.mxu0 0.0
    %623 = vmatprep.subr.mxu0 0.0
    %624 = vmatpush1.msra.mxu0 0.0
    %625 = vmatprep.subr.mxu0 0.0
    %626 = vmatpush1.msra.mxu0 0.0
    %627 = vmatprep.subr.mxu0 0.0
    %628 = vmatpush1.msra.mxu0 0.0
    %629 = vmatprep.mubr.f32.mxu0 0.0
    %630 = vmatmul.mubr.f32.gmra.mrb[0].mxu0 %v563
    %v631 = vpop.f32.mrb[0].mxu0
    %v632 = vadd.f32 0.0, %v631
    %v633 = vpop.f32.mrb[0].mxu0
    %634 = vdwg.mxu0
    %v635 = vadd.f32 %v207, %v632
    %v636 = vxor.u32 %v635, 2147483648
    %v637 = vmul.f32 %v636, 1.442695
    %v638 = vpow.pop %v637
    %v639 = vadd.f32 %v638, 1.0
    %v640 = vrcp.pop %v639
    %v641 = vmul.f32 1.0, %v640
    %v642 = vtanh.pop %v635
    %v643 = vmul.f32 %v641, %v553
    %645 = vrot.lane.b32.xlu0 %v642, 64
    %v646 = vpop.permute.xlu0 %645
    %v648 = vmul.f32 %v641, %v646
    %650 = vrot.lane.b32.xlu0 %v648, 32
    %v651 = vpop.permute.xlu0 %650
    %v653 = vadd.f32 %v643, %v651
    %v654 = vtanh.pop %v653
    %656 = vrot.lane.b32.xlu0 %v654, 64
    %v657 = vpop.permute.xlu0 %656
    %v659 = vmul.f32 %v641, %v657
    %661 = vrot.lane.b32.xlu0 %v659, 32
    %v662 = vpop.permute.xlu0 %661
    %v663 = vsel %vm265, %v662, 0
    %665 = vmatprep.subr.mxu0 0.0
    %666 = vmatpush1.msra.mxu0 %v231
    %667 = vmatprep.subr.mxu0 0.0
    %668 = vmatpush1.msra.mxu0 %v232
    %669 = vmatprep.subr.mxu0 0.0
    %670 = vmatpush1.msra.mxu0 %v233
    %671 = vmatprep.subr.mxu0 0.0
    %672 = vmatpush1.msra.mxu0 %v234
    %673 = vmatprep.subr.mxu0 0.0
    %674 = vmatpush1.msra.mxu0 0.0
    %675 = vmatprep.subr.mxu0 0.0
    %676 = vmatpush1.msra.mxu0 0.0
    %677 = vmatprep.subr.mxu0 0.0
    %678 = vmatpush1.msra.mxu0 0.0
    %679 = vmatprep.subr.mxu0 0.0
    %680 = vmatpush1.msra.mxu0 0.0
    %681 = vmatprep.subr.mxu0 0.0
    %682 = vmatpush1.msra.mxu0 0.0
    %683 = vmatprep.subr.mxu0 0.0
    %684 = vmatpush1.msra.mxu0 0.0
    %685 = vmatprep.subr.mxu0 0.0
    %686 = vmatpush1.msra.mxu0 0.0
    %687 = vmatprep.subr.mxu0 0.0
    %688 = vmatpush1.msra.mxu0 0.0
    %689 = vmatprep.subr.mxu0 0.0
    %690 = vmatpush1.msra.mxu0 0.0
    %691 = vmatprep.subr.mxu0 0.0
    %692 = vmatpush1.msra.mxu0 0.0
    %693 = vmatprep.subr.mxu0 0.0
    %694 = vmatpush1.msra.mxu0 0.0
    %695 = vmatprep.subr.mxu0 0.0
    %696 = vmatpush1.msra.mxu0 0.0
    %697 = vmatprep.subr.mxu0 0.0
    %698 = vmatpush1.msra.mxu0 0.0
    %699 = vmatprep.subr.mxu0 0.0
    %700 = vmatpush1.msra.mxu0 0.0
    %701 = vmatprep.subr.mxu0 0.0
    %702 = vmatpush1.msra.mxu0 0.0
    %703 = vmatprep.subr.mxu0 0.0
    %704 = vmatpush1.msra.mxu0 0.0
    %705 = vmatprep.subr.mxu0 0.0
    %706 = vmatpush1.msra.mxu0 0.0
    %707 = vmatprep.subr.mxu0 0.0
    %708 = vmatpush1.msra.mxu0 0.0
    %709 = vmatprep.subr.mxu0 0.0
    %710 = vmatpush1.msra.mxu0 0.0
    %711 = vmatprep.subr.mxu0 0.0
    %712 = vmatpush1.msra.mxu0 0.0
    %713 = vmatprep.subr.mxu0 0.0
    %714 = vmatpush1.msra.mxu0 0.0
    %715 = vmatprep.subr.mxu0 0.0
    %716 = vmatpush1.msra.mxu0 0.0
    %717 = vmatprep.subr.mxu0 0.0
    %718 = vmatpush1.msra.mxu0 0.0
    %719 = vmatprep.subr.mxu0 0.0
    %720 = vmatpush1.msra.mxu0 0.0
    %721 = vmatprep.subr.mxu0 0.0
    %722 = vmatpush1.msra.mxu0 0.0
    %723 = vmatprep.subr.mxu0 0.0
    %724 = vmatpush1.msra.mxu0 0.0
    %725 = vmatprep.subr.mxu0 0.0
    %726 = vmatpush1.msra.mxu0 0.0
    %727 = vmatprep.subr.mxu0 0.0
    %728 = vmatpush1.msra.mxu0 0.0
    %729 = vmatprep.mubr.f32.mxu0 0.0
    %730 = vmatmul.mubr.f32.gmra.mrb[0].mxu0 %v663
    %v731 = vpop.f32.mrb[0].mxu0
    %v732 = vadd.f32 0.0, %v731
    %v733 = vpop.f32.mrb[0].mxu0
    %734 = vdwg.mxu0
    %v735 = vadd.f32 %v212, %v732
    %v736 = vxor.u32 %v735, 2147483648
    %v737 = vmul.f32 %v736, 1.442695
    %v738 = vpow.pop %v737
    %v739 = vadd.f32 %v738, 1.0
    %v740 = vrcp.pop %v739
    %v741 = vmul.f32 1.0, %v740
    %v742 = vtanh.pop %v735
    %v743 = vmul.f32 %v741, %v653
    %745 = vrot.lane.b32.xlu0 %v742, 64
    %v746 = vpop.permute.xlu0 %745
    %v748 = vmul.f32 %v741, %v746
    %750 = vrot.lane.b32.xlu0 %v748, 32
    %v751 = vpop.permute.xlu0 %750
    %v753 = vadd.f32 %v743, %v751
    %v754 = vtanh.pop %v753
    %756 = vrot.lane.b32.xlu0 %v754, 64
    %v757 = vpop.permute.xlu0 %756
    %v759 = vmul.f32 %v741, %v757
    %761 = vrot.lane.b32.xlu0 %v759, 32
    %v762 = vpop.permute.xlu0 %761
    %v763 = vsel %vm265, %v762, 0
    %765 = vmatprep.subr.mxu0 0.0
    %766 = vmatpush1.msra.mxu0 %v231
    %767 = vmatprep.subr.mxu0 0.0
    %768 = vmatpush1.msra.mxu0 %v232
    %769 = vmatprep.subr.mxu0 0.0
    %770 = vmatpush1.msra.mxu0 %v233
    %771 = vmatprep.subr.mxu0 0.0
    %772 = vmatpush1.msra.mxu0 %v234
    %773 = vmatprep.subr.mxu0 0.0
    %774 = vmatpush1.msra.mxu0 0.0
    %775 = vmatprep.subr.mxu0 0.0
    %776 = vmatpush1.msra.mxu0 0.0
    %777 = vmatprep.subr.mxu0 0.0
    %778 = vmatpush1.msra.mxu0 0.0
    %779 = vmatprep.subr.mxu0 0.0
    %780 = vmatpush1.msra.mxu0 0.0
    %781 = vmatprep.subr.mxu0 0.0
    %782 = vmatpush1.msra.mxu0 0.0
    %783 = vmatprep.subr.mxu0 0.0
    %784 = vmatpush1.msra.mxu0 0.0
    %785 = vmatprep.subr.mxu0 0.0
    %786 = vmatpush1.msra.mxu0 0.0
    %787 = vmatprep.subr.mxu0 0.0
    %788 = vmatpush1.msra.mxu0 0.0
    %789 = vmatprep.subr.mxu0 0.0
    %790 = vmatpush1.msra.mxu0 0.0
    %791 = vmatprep.subr.mxu0 0.0
    %792 = vmatpush1.msra.mxu0 0.0
    %793 = vmatprep.subr.mxu0 0.0
    %794 = vmatpush1.msra.mxu0 0.0
    %795 = vmatprep.subr.mxu0 0.0
    %796 = vmatpush1.msra.mxu0 0.0
    %797 = vmatprep.subr.mxu0 0.0
    %798 = vmatpush1.msra.mxu0 0.0
    %799 = vmatprep.subr.mxu0 0.0
    %800 = vmatpush1.msra.mxu0 0.0
    %801 = vmatprep.subr.mxu0 0.0
    %802 = vmatpush1.msra.mxu0 0.0
    %803 = vmatprep.subr.mxu0 0.0
    %804 = vmatpush1.msra.mxu0 0.0
    %805 = vmatprep.subr.mxu0 0.0
    %806 = vmatpush1.msra.mxu0 0.0
    %807 = vmatprep.subr.mxu0 0.0
    %808 = vmatpush1.msra.mxu0 0.0
    %809 = vmatprep.subr.mxu0 0.0
    %810 = vmatpush1.msra.mxu0 0.0
    %811 = vmatprep.subr.mxu0 0.0
    %812 = vmatpush1.msra.mxu0 0.0
    %813 = vmatprep.subr.mxu0 0.0
    %814 = vmatpush1.msra.mxu0 0.0
    %815 = vmatprep.subr.mxu0 0.0
    %816 = vmatpush1.msra.mxu0 0.0
    %817 = vmatprep.subr.mxu0 0.0
    %818 = vmatpush1.msra.mxu0 0.0
    %819 = vmatprep.subr.mxu0 0.0
    %820 = vmatpush1.msra.mxu0 0.0
    %821 = vmatprep.subr.mxu0 0.0
    %822 = vmatpush1.msra.mxu0 0.0
    %823 = vmatprep.subr.mxu0 0.0
    %824 = vmatpush1.msra.mxu0 0.0
    %825 = vmatprep.subr.mxu0 0.0
    %826 = vmatpush1.msra.mxu0 0.0
    %827 = vmatprep.subr.mxu0 0.0
    %828 = vmatpush1.msra.mxu0 0.0
    %829 = vmatprep.mubr.f32.mxu0 0.0
    %830 = vmatmul.mubr.f32.gmra.mrb[0].mxu0 %v763
    %v831 = vpop.f32.mrb[0].mxu0
    %v832 = vadd.f32 0.0, %v831
    %v833 = vpop.f32.mrb[0].mxu0
    %834 = vdwg.mxu0
    %v835 = vadd.f32 %v217, %v832
    %v836 = vxor.u32 %v835, 2147483648
    %v837 = vmul.f32 %v836, 1.442695
    %v838 = vpow.pop %v837
    %v839 = vadd.f32 %v838, 1.0
    %v840 = vrcp.pop %v839
    %v841 = vmul.f32 1.0, %v840
    %v842 = vtanh.pop %v835
    %v843 = vmul.f32 %v841, %v753
    %845 = vrot.lane.b32.xlu0 %v842, 64
    %v846 = vpop.permute.xlu0 %845
    %v848 = vmul.f32 %v841, %v846
    %850 = vrot.lane.b32.xlu0 %v848, 32
    %v851 = vpop.permute.xlu0 %850
    %v853 = vadd.f32 %v843, %v851
    %v854 = vtanh.pop %v853
    %856 = vrot.lane.b32.xlu0 %v854, 64
    %v857 = vpop.permute.xlu0 %856
    %v859 = vmul.f32 %v841, %v857
    %861 = vrot.lane.b32.xlu0 %v859, 32
    %v862 = vpop.permute.xlu0 %861
    %v863 = vsel %vm265, %v862, 0
    %865 = vmatprep.subr.mxu0 0.0
    %866 = vmatpush1.msra.mxu0 %v231
    %867 = vmatprep.subr.mxu0 0.0
    %868 = vmatpush1.msra.mxu0 %v232
    %869 = vmatprep.subr.mxu0 0.0
    %870 = vmatpush1.msra.mxu0 %v233
    %871 = vmatprep.subr.mxu0 0.0
    %872 = vmatpush1.msra.mxu0 %v234
    %873 = vmatprep.subr.mxu0 0.0
    %874 = vmatpush1.msra.mxu0 0.0
    %875 = vmatprep.subr.mxu0 0.0
    %876 = vmatpush1.msra.mxu0 0.0
    %877 = vmatprep.subr.mxu0 0.0
    %878 = vmatpush1.msra.mxu0 0.0
    %879 = vmatprep.subr.mxu0 0.0
    %880 = vmatpush1.msra.mxu0 0.0
    %881 = vmatprep.subr.mxu0 0.0
    %882 = vmatpush1.msra.mxu0 0.0
    %883 = vmatprep.subr.mxu0 0.0
    %884 = vmatpush1.msra.mxu0 0.0
    %885 = vmatprep.subr.mxu0 0.0
    %886 = vmatpush1.msra.mxu0 0.0
    %887 = vmatprep.subr.mxu0 0.0
    %888 = vmatpush1.msra.mxu0 0.0
    %889 = vmatprep.subr.mxu0 0.0
    %890 = vmatpush1.msra.mxu0 0.0
    %891 = vmatprep.subr.mxu0 0.0
    %892 = vmatpush1.msra.mxu0 0.0
    %893 = vmatprep.subr.mxu0 0.0
    %894 = vmatpush1.msra.mxu0 0.0
    %895 = vmatprep.subr.mxu0 0.0
    %896 = vmatpush1.msra.mxu0 0.0
    %897 = vmatprep.subr.mxu0 0.0
    %898 = vmatpush1.msra.mxu0 0.0
    %899 = vmatprep.subr.mxu0 0.0
    %900 = vmatpush1.msra.mxu0 0.0
    %901 = vmatprep.subr.mxu0 0.0
    %902 = vmatpush1.msra.mxu0 0.0
    %903 = vmatprep.subr.mxu0 0.0
    %904 = vmatpush1.msra.mxu0 0.0
    %905 = vmatprep.subr.mxu0 0.0
    %906 = vmatpush1.msra.mxu0 0.0
    %907 = vmatprep.subr.mxu0 0.0
    %908 = vmatpush1.msra.mxu0 0.0
    %909 = vmatprep.subr.mxu0 0.0
    %910 = vmatpush1.msra.mxu0 0.0
    %911 = vmatprep.subr.mxu0 0.0
    %912 = vmatpush1.msra.mxu0 0.0
    %913 = vmatprep.subr.mxu0 0.0
    %914 = vmatpush1.msra.mxu0 0.0
    %915 = vmatprep.subr.mxu0 0.0
    %916 = vmatpush1.msra.mxu0 0.0
    %917 = vmatprep.subr.mxu0 0.0
    %918 = vmatpush1.msra.mxu0 0.0
    %919 = vmatprep.subr.mxu0 0.0
    %920 = vmatpush1.msra.mxu0 0.0
    %921 = vmatprep.subr.mxu0 0.0
    %922 = vmatpush1.msra.mxu0 0.0
    %923 = vmatprep.subr.mxu0 0.0
    %924 = vmatpush1.msra.mxu0 0.0
    %925 = vmatprep.subr.mxu0 0.0
    %926 = vmatpush1.msra.mxu0 0.0
    %927 = vmatprep.subr.mxu0 0.0
    %928 = vmatpush1.msra.mxu0 0.0
    %929 = vmatprep.mubr.f32.mxu0 0.0
    %930 = vmatmul.mubr.f32.gmra.mrb[0].mxu0 %v863
    %v931 = vpop.f32.mrb[0].mxu0
    %v932 = vadd.f32 0.0, %v931
    %v933 = vpop.f32.mrb[0].mxu0
    %934 = vdwg.mxu0
    %v935 = vadd.f32 %v222, %v932
    %v936 = vxor.u32 %v935, 2147483648
    %v937 = vmul.f32 %v936, 1.442695
    %v938 = vpow.pop %v937
    %v939 = vadd.f32 %v938, 1.0
    %v940 = vrcp.pop %v939
    %v941 = vmul.f32 1.0, %v940
    %v942 = vtanh.pop %v935
    %v943 = vmul.f32 %v941, %v853
    %945 = vrot.lane.b32.xlu0 %v942, 64
    %v946 = vpop.permute.xlu0 %945
    %v948 = vmul.f32 %v941, %v946
    %950 = vrot.lane.b32.xlu0 %v948, 32
    %v951 = vpop.permute.xlu0 %950
    %v953 = vadd.f32 %v943, %v951
    %v954 = vtanh.pop %v953
    %956 = vrot.lane.b32.xlu0 %v954, 64
    %v957 = vpop.permute.xlu0 %956
    %v959 = vmul.f32 %v941, %v957
    %961 = vrot.lane.b32.xlu0 %v959, 32
    %v962 = vpop.permute.xlu0 %961
    %v963 = vsel %vm265, %v962, 0
    %965 = vmatprep.subr.mxu0 0.0
    %966 = vmatpush1.msra.mxu0 %v231
    %967 = vmatprep.subr.mxu0 0.0
    %968 = vmatpush1.msra.mxu0 %v232
    %969 = vmatprep.subr.mxu0 0.0
    %970 = vmatpush1.msra.mxu0 %v233
    %971 = vmatprep.subr.mxu0 0.0
    %972 = vmatpush1.msra.mxu0 %v234
    %973 = vmatprep.subr.mxu0 0.0
    %974 = vmatpush1.msra.mxu0 0.0
    %975 = vmatprep.subr.mxu0 0.0
    %976 = vmatpush1.msra.mxu0 0.0
    %977 = vmatprep.subr.mxu0 0.0
    %978 = vmatpush1.msra.mxu0 0.0
    %979 = vmatprep.subr.mxu0 0.0
    %980 = vmatpush1.msra.mxu0 0.0
    %981 = vmatprep.subr.mxu0 0.0
    %982 = vmatpush1.msra.mxu0 0.0
    %983 = vmatprep.subr.mxu0 0.0
    %984 = vmatpush1.msra.mxu0 0.0
    %985 = vmatprep.subr.mxu0 0.0
    %986 = vmatpush1.msra.mxu0 0.0
    %987 = vmatprep.subr.mxu0 0.0
    %988 = vmatpush1.msra.mxu0 0.0
    %989 = vmatprep.subr.mxu0 0.0
    %990 = vmatpush1.msra.mxu0 0.0
    %991 = vmatprep.subr.mxu0 0.0
    %992 = vmatpush1.msra.mxu0 0.0
    %993 = vmatprep.subr.mxu0 0.0
    %994 = vmatpush1.msra.mxu0 0.0
    %995 = vmatprep.subr.mxu0 0.0
    %996 = vmatpush1.msra.mxu0 0.0
    %997 = vmatprep.subr.mxu0 0.0
    %998 = vmatpush1.msra.mxu0 0.0
    %999 = vmatprep.subr.mxu0 0.0
    %1000 = vmatpush1.msra.mxu0 0.0
    %1001 = vmatprep.subr.mxu0 0.0
    %1002 = vmatpush1.msra.mxu0 0.0
    %1003 = vmatprep.subr.mxu0 0.0
    %1004 = vmatpush1.msra.mxu0 0.0
    %1005 = vmatprep.subr.mxu0 0.0
    %1006 = vmatpush1.msra.mxu0 0.0
    %1007 = vmatprep.subr.mxu0 0.0
    %1008 = vmatpush1.msra.mxu0 0.0
    %1009 = vmatprep.subr.mxu0 0.0
    %1010 = vmatpush1.msra.mxu0 0.0
    %1011 = vmatprep.subr.mxu0 0.0
    %1012 = vmatpush1.msra.mxu0 0.0
    %1013 = vmatprep.subr.mxu0 0.0
    %1014 = vmatpush1.msra.mxu0 0.0
    %1015 = vmatprep.subr.mxu0 0.0
    %1016 = vmatpush1.msra.mxu0 0.0
    %1017 = vmatprep.subr.mxu0 0.0
    %1018 = vmatpush1.msra.mxu0 0.0
    %1019 = vmatprep.subr.mxu0 0.0
    %1020 = vmatpush1.msra.mxu0 0.0
    %1021 = vmatprep.subr.mxu0 0.0
    %1022 = vmatpush1.msra.mxu0 0.0
    %1023 = vmatprep.subr.mxu0 0.0
    %1024 = vmatpush1.msra.mxu0 0.0
    %1025 = vmatprep.subr.mxu0 0.0
    %1026 = vmatpush1.msra.mxu0 0.0
    %1027 = vmatprep.subr.mxu0 0.0
    %1028 = vmatpush1.msra.mxu0 0.0
    %1029 = vmatprep.mubr.f32.mxu0 0.0
    %1030 = vmatmul.mubr.f32.gmra.mrb[0].mxu0 %v963
    %v1031 = vpop.f32.mrb[0].mxu0
    %v1032 = vadd.f32 0.0, %v1031
    %v1033 = vpop.f32.mrb[0].mxu0
    %1034 = vdwg.mxu0
    %v1035 = vadd.f32 %v227, %v1032
    %v1036 = vxor.u32 %v1035, 2147483648
    %v1037 = vmul.f32 %v1036, 1.442695
    %v1038 = vpow.pop %v1037
    %v1039 = vadd.f32 %v1038, 1.0
    %v1040 = vrcp.pop %v1039
    %v1041 = vmul.f32 1.0, %v1040
    %v1042 = vtanh.pop %v1035
    %v1043 = vmul.f32 %v1041, %v953
    %1045 = vrot.lane.b32.xlu0 %v1042, 64
    %v1046 = vpop.permute.xlu0 %1045
    %v1048 = vmul.f32 %v1041, %v1046
    %1050 = vrot.lane.b32.xlu0 %v1048, 32
    %v1051 = vpop.permute.xlu0 %1050
    %v1053 = vadd.f32 %v1043, %v1051
    %v1054 = vtanh.pop %v1053
    %1056 = vrot.lane.b32.xlu0 %v1054, 64
    %v1057 = vpop.permute.xlu0 %1056
    %v1059 = vmul.f32 %v1041, %v1057
    %1061 = vrot.lane.b32.xlu0 %v1059, 32
    %v1062 = vpop.permute.xlu0 %1061
    %v1063 = vsel %vm265, %v1062, 0
    %1065 = vmatprep.subr.mxu0 0.0
    %1066 = vmatpush1.msra.mxu0 %v235
    %1067 = vmatprep.subr.mxu0 0.0
    %1068 = vmatpush1.msra.mxu0 %v236
    %1069 = vmatprep.subr.mxu0 0.0
    %1070 = vmatpush1.msra.mxu0 %v237
    %1071 = vmatprep.subr.mxu0 0.0
    %1072 = vmatpush1.msra.mxu0 %v238
    %1073 = vmatprep.subr.mxu0 0.0
    %1074 = vmatpush1.msra.mxu0 0.0
    %1075 = vmatprep.subr.mxu0 0.0
    %1076 = vmatpush1.msra.mxu0 0.0
    %1077 = vmatprep.subr.mxu0 0.0
    %1078 = vmatpush1.msra.mxu0 0.0
    %1079 = vmatprep.subr.mxu0 0.0
    %1080 = vmatpush1.msra.mxu0 0.0
    %1081 = vmatprep.subr.mxu0 0.0
    %1082 = vmatpush1.msra.mxu0 0.0
    %1083 = vmatprep.subr.mxu0 0.0
    %1084 = vmatpush1.msra.mxu0 0.0
    %1085 = vmatprep.subr.mxu0 0.0
    %1086 = vmatpush1.msra.mxu0 0.0
    %1087 = vmatprep.subr.mxu0 0.0
    %1088 = vmatpush1.msra.mxu0 0.0
    %1089 = vmatprep.subr.mxu0 0.0
    %1090 = vmatpush1.msra.mxu0 0.0
    %1091 = vmatprep.subr.mxu0 0.0
    %1092 = vmatpush1.msra.mxu0 0.0
    %1093 = vmatprep.subr.mxu0 0.0
    %1094 = vmatpush1.msra.mxu0 0.0
    %1095 = vmatprep.subr.mxu0 0.0
    %1096 = vmatpush1.msra.mxu0 0.0
    %1097 = vmatprep.subr.mxu0 0.0
    %1098 = vmatpush1.msra.mxu0 0.0
    %1099 = vmatprep.subr.mxu0 0.0
    %1100 = vmatpush1.msra.mxu0 0.0
    %1101 = vmatprep.subr.mxu0 0.0
    %1102 = vmatpush1.msra.mxu0 0.0
    %1103 = vmatprep.subr.mxu0 0.0
    %1104 = vmatpush1.msra.mxu0 0.0
    %1105 = vmatprep.subr.mxu0 0.0
    %1106 = vmatpush1.msra.mxu0 0.0
    %1107 = vmatprep.subr.mxu0 0.0
    %1108 = vmatpush1.msra.mxu0 0.0
    %1109 = vmatprep.subr.mxu0 0.0
    %1110 = vmatpush1.msra.mxu0 0.0
    %1111 = vmatprep.subr.mxu0 0.0
    %1112 = vmatpush1.msra.mxu0 0.0
    %1113 = vmatprep.subr.mxu0 0.0
    %1114 = vmatpush1.msra.mxu0 0.0
    %1115 = vmatprep.subr.mxu0 0.0
    %1116 = vmatpush1.msra.mxu0 0.0
    %1117 = vmatprep.subr.mxu0 0.0
    %1118 = vmatpush1.msra.mxu0 0.0
    %1119 = vmatprep.subr.mxu0 0.0
    %1120 = vmatpush1.msra.mxu0 0.0
    %1121 = vmatprep.subr.mxu0 0.0
    %1122 = vmatpush1.msra.mxu0 0.0
    %1123 = vmatprep.subr.mxu0 0.0
    %1124 = vmatpush1.msra.mxu0 0.0
    %1125 = vmatprep.subr.mxu0 0.0
    %1126 = vmatpush1.msra.mxu0 0.0
    %1127 = vmatprep.subr.mxu0 0.0
    %1128 = vmatpush1.msra.mxu0 0.0
    %1129 = vmatprep.mubr.f32.mxu0 0.0
    %1130 = vmatmul.mubr.f32.gmra.mrb[0].mxu0 %v1063
    %v1131 = vpop.f32.mrb[0].mxu0
    %v1132 = vadd.f32 %v335, %v1131
    %v1133 = vpop.f32.mrb[0].mxu0
    %1134 = vdwg.mxu0
    %1135 = vst [vmem:[#allocation5] sm:$0xff] %v1132
    // Predicated region
    $region14: #{bilstm_forward.1} parent=1 // pred_check
      _
    $region15: #{bilstm_forward.1} parent=1 // pred_check_branch
      %1137 = sbr.rel (0) target = $region17
    $region16: #{bilstm_forward.1} parent=1 // pred_region
      %s1139 = ssub.s32 128, 128
      %1140 = vsyncadd [#allocation4], %s1139
      %s1142 = sshll.u32 [#allocation5], 4
      %s1143 = int_to_ptr.vmem [resolvable:$true] %s1142
      %1145 = dma.vmem_to_hbm [thread:$0]  %s1143, 128, %s2, [#allocation4]
    $region17: #{bilstm_forward.1} parent=1 // pred_fallthru
      _
    // Predicated region
    $region18: #{bilstm_forward.1} parent=1 // pred_check
      _
    $region19: #{bilstm_forward.1} parent=1 // pred_check_branch
      %1147 = sbr.rel (0) target = $region21
    $region20: #{bilstm_forward.1} parent=1 // pred_region
      %1148 = dma.done [#allocation4], 128
    $region21: #{bilstm_forward.1} parent=1 // pred_fallthru
      _
    %1149 = vsyncpa [#allocation3], 1
    %1150 = vsyncpa [#allocation4], 1

</llo_original>
